<compile_context>
chip_gen: v6e
topology: v6e:2x2x1
jax: 0.10.0
libtpu: 0.0.40
codegen_flags: <defaults>
</compile_context>

<pallas_src>
import functools

import jax
import jax.numpy as jnp
from jax import lax
from jax.experimental import pallas as pl
from jax.experimental.pallas import tpu as pltpu


def _vmem_capacity_bytes():
    try:
        return int(pltpu.get_tpu_info().vmem_capacity_bytes)
    except Exception:
        return 64 * 1024 * 1024  # conservative (v7x per-TC physical VMEM)


# ----------------------------------------------------------------------------
# Kernel 1: jaccard matching + box/landmark encoding.
# Output slab rows: 0-3 box targets, 4-13 landmark targets, 14 conf label, 15 pad.
# ----------------------------------------------------------------------------
def _match_encode_kernel(tgt_ref, tgtT_ref, pri_ref, out_ref, *, threshold):
    tgt = tgt_ref[0]        # (NOBJ, 16)  [x1 y1 x2 y2 | 10 landm | label | pad]
    tgtT = tgtT_ref[0]      # (16, NOBJ)
    NOBJ = tgt.shape[0]
    F = tgtT.shape[0]
    P = pri_ref.shape[1]

    pcx = pri_ref[0:1, :]
    pcy = pri_ref[1:2, :]
    pw = pri_ref[2:3, :]
    ph = pri_ref[3:4, :]
    px1 = pri_ref[4:5, :]
    py1 = pri_ref[5:6, :]
    px2 = pri_ref[6:7, :]
    py2 = pri_ref[7:8, :]

    gx1 = tgt[:, 0:1]
    gy1 = tgt[:, 1:2]
    gx2 = tgt[:, 2:3]
    gy2 = tgt[:, 3:4]

    # jaccard(truths, point_form(priors)) -> (NOBJ, P); exact divide keeps
    # threshold/tie parity with the reference, eps guards 0/0 on degenerate boxes.
    iw = jnp.maximum(jnp.minimum(gx2, px2) - jnp.maximum(gx1, px1), 0.0)
    ih = jnp.maximum(jnp.minimum(gy2, py2) - jnp.maximum(gy1, py1), 0.0)
    inter = iw * ih
    area_g = (gx2 - gx1) * (gy2 - gy1)          # (NOBJ, 1)
    area_p = (px2 - px1) * (py2 - py1)          # (1, P)
    union = jnp.maximum(area_g + area_p - inter, 1e-12)
    overlaps = inter / union

    # NOTE(review): iota_p/iota_j/hit are the unavoidable (NOBJ,P) temporaries kept
    # for exact argmax/index-fill recovery; everything else reuses these.
    iota_p = lax.broadcasted_iota(jnp.int32, (NOBJ, P), 1)
    iota_j = lax.broadcasted_iota(jnp.int32, (NOBJ, P), 0)

    # best prior for each GT
    best_prior_overlap = jnp.max(overlaps, axis=1, keepdims=True)             # (NOBJ,1)
    best_prior_idx = jnp.min(
        jnp.where(overlaps == best_prior_overlap, iota_p, P), axis=1, keepdims=True)
    valid_gt = best_prior_overlap >= 0.2                                       # ignore hard GT
    any_valid = jnp.max(valid_gt.astype(jnp.int32)) > 0

    # best GT for each prior
    best_truth_overlap = jnp.max(overlaps, axis=0, keepdims=True)             # (1,P)
    best_truth_idx = jnp.min(
        jnp.where(overlaps == best_truth_overlap, iota_j, NOBJ), axis=0, keepdims=True)

    # index_fill_: best prior of every valid GT gets overlap 2 (guaranteed positive)
    hit = iota_p == best_prior_idx                                            # (NOBJ,P)
    forced2 = jnp.max((hit & valid_gt).astype(jnp.int32), axis=0, keepdims=True) > 0
    best_truth_overlap = jnp.where(forced2, 2.0, best_truth_overlap)

    # "for j: best_truth_idx[best_prior_idx[j]] = j"  (last j wins)
    forced_idx = jnp.max(jnp.where(hit, iota_j, -1), axis=0, keepdims=True)
    best_truth_idx = jnp.where(forced_idx >= 0, forced_idx, best_truth_idx)

    # matched GT gather: VPU one-hot select for small NOBJ, MXU matmul otherwise.
    if NOBJ <= 16:
        matchedT = jnp.broadcast_to(tgtT[:, 0:1], (F, P))
        for j in range(1, NOBJ):
            matchedT = jnp.where(best_truth_idx == j, tgtT[:, j:j + 1], matchedT)
    else:
        onehot = (iota_j == best_truth_idx).astype(jnp.float32)               # (NOBJ, P)
        matchedT = jnp.dot(tgtT, onehot, preferred_element_type=jnp.float32,
                           precision=lax.Precision.HIGHEST)                   # (16, P)

    v0, v1 = 0.1, 0.2  # variance
    inv_pw = pl.reciprocal(pw, approx=True)       # EUP: near-free reciprocals
    inv_ph = pl.reciprocal(ph, approx=True)
    inv_vpw = inv_pw * (1.0 / v0)
    inv_vph = inv_ph * (1.0 / v0)

    # encode(matched, priors, variance)
    mx1 = matchedT[0:1]
    my1 = matchedT[1:2]
    mx2 = matchedT[2:3]
    my2 = matchedT[3:4]
    g_cx = ((mx1 + mx2) * 0.5 - pcx) * inv_vpw
    g_cy = ((my1 + my2) * 0.5 - pcy) * inv_vph
    # eps clamp: degenerate matched boxes must not produce -inf/NaN targets
    g_w = jnp.log(jnp.maximum(mx2 - mx1, 1e-8) * inv_pw) * (1.0 / v1)
    g_h = jnp.log(jnp.maximum(my2 - my1, 1e-8) * inv_ph) * (1.0 / v1)
    rows = [g_cx, g_cy, g_w, g_h]

    # encode_landm(matched_landm, priors, variance)
    for k in range(5):
        lx = matchedT[4 + 2 * k: 5 + 2 * k]
        ly = matchedT[5 + 2 * k: 6 + 2 * k]
        rows.append((lx - pcx) * inv_vpw)
        rows.append((ly - pcy) * inv_vph)

    conf = matchedT[14:15]                                    # gathered labels
    conf = jnp.where(best_truth_overlap < threshold, 0.0, conf)
    rows.append(conf)
    rows.append(jnp.zeros_like(conf))                         # pad row 15

    slab = jnp.concatenate(rows, axis=0)                      # (16, P)
    # early-return path of match(): no valid GT -> zero loc / conf / landm
    out_ref[...] = jnp.where(any_valid, slab, 0.0)


# ----------------------------------------------------------------------------
# Kernel 2: per-prior cross entropy  lse(conf) - conf[target]   (unmasked)
#   reused for hard negative mining AND the final loss_c sum
# ----------------------------------------------------------------------------
def _conf_ce_kernel(confT_ref, label_ref, out_ref):
    x = confT_ref[...]                         # (C, TN)
    lbl = label_ref[...]                       # (1, TN) float labels in {-1, 0, 1}
    t = jnp.where(lbl != 0.0, 1, 0)            # collapsed target class (conf_t[pos]=1)
    m = jnp.max(x, axis=0, keepdims=True)      # per-column max (LSE is shift-invariant)
    lse = jnp.log(jnp.sum(jnp.exp(x - m), axis=0, keepdims=True)) + m
    cls = lax.broadcasted_iota(jnp.int32, x.shape, 0)
    gathered = jnp.sum(jnp.where(cls == t, x, 0.0), axis=0, keepdims=True)
    out_ref[...] = lse - gathered


# ----------------------------------------------------------------------------
# Kernel 3: masked SmoothL1 sums, masked CE sum, positive counts.
#   grid = (ncore, steps): leading "parallel" axis splits the tile range across
#   TensorCores (v7x); inner "arbitrary" axis accumulates into a VMEM scratch,
#   the (8,128) output block is written once at the last step of each core.
#   loc/landm come in their native (tile_n, K) layout and are re-layouted to
#   feature-major on the MXU via an identity dot (q @ k.T dimension numbers).
# ----------------------------------------------------------------------------
def _final_loss_kernel(loc_ref, landm_ref, enc_ref, ce_ref, sel_ref, out_ref, acc_ref):
    i = pl.program_id(1)
    steps = pl.num_programs(1)

    conf_t = enc_ref[14:15, :]                 # (1, TN) float labels
    pos = conf_t != 0.0                        # all positives
    pos1 = conf_t > 0.0                        # positives with landmarks

    # feature-major views of the predictions, via the MXU (idle in this kernel):
    # dot_general(I, x) contracting both minor dims == I @ x.T  (supported q@k.T form)
    dn = (((1,), (1,)), ((), ()))
    eye4 = jnp.eye(8, 4, dtype=jnp.float32)
    eye10 = jnp.eye(16, 10, dtype=jnp.float32)
    locT = lax.dot_general(eye4, loc_ref[...], dn,
                           precision=lax.Precision.HIGHEST,
                           preferred_element_type=jnp.float32)[0:4]    # (4, TN)
    landmT = lax.dot_general(eye10, landm_ref[...], dn,
                             precision=lax.Precision.HIGHEST,
                             preferred_element_type=jnp.float32)[0:10]  # (10, TN)

    # loss_l: SmoothL1 (beta=1) summed over positive priors
    d = locT - enc_ref[0:4, :]
    ad = jnp.abs(d)
    sl1 = jnp.where(ad < 1.0, 0.5 * d * d, ad - 0.5)
    loss_l = jnp.sum(jnp.where(pos, sl1, 0.0))

    # loss_landm: SmoothL1 summed over priors with label > 0
    dl = landmT - enc_ref[4:14, :]
    adl = jnp.abs(dl)
    sl1l = jnp.where(adl < 1.0, 0.5 * dl * dl, adl - 0.5)
    loss_landm = jnp.sum(jnp.where(pos1, sl1l, 0.0))

    # loss_c: cross entropy (sum) over selected priors, reusing the kernel-2 CE row
    loss_c = jnp.sum(jnp.where(sel_ref[...] != 0.0, ce_ref[...], 0.0))

    n_pos = jnp.sum(pos.astype(jnp.float32))
    n_pos1 = jnp.sum(pos1.astype(jnp.float32))

    tile = jnp.concatenate([
        jnp.full((1, 128), loss_l, jnp.float32),
        jnp.full((1, 128), loss_c, jnp.float32),
        jnp.full((1, 128), loss_landm, jnp.float32),
        jnp.full((1, 128), n_pos, jnp.float32),
        jnp.full((1, 128), n_pos1, jnp.float32),
        jnp.zeros((3, 128), jnp.float32),
    ], axis=0)                                 # (8, 128)

    acc_ref[...] = jnp.where(i == 0, tile, acc_ref[...] + tile)

    @pl.when(i == steps - 1)
    def _():
        out_ref[0] = acc_ref[...]


def _pick_tile_n(n, cap=4096):
    """Largest multiple of 128 that divides n (<= cap); whole axis as fallback."""
    if n % 128 != 0:
        return n
    t = min(cap, n)
    t -= t % 128
    while t >= 128:
        if n % t == 0:
            return t
        t -= 128
    return n


# ----------------------------------------------------------------------------
# Wrapper reproducing MultiBoxLoss.forward
# ----------------------------------------------------------------------------
def multibox_loss(predictions, targets, priors, *, num_classes=2,
                  overlap_thresh=0.35, negpos_ratio=7, max_hard_negatives=None):
    loc_data, conf_data, landm_data = predictions
    B, P, _ = loc_data.shape
    NOBJ = targets.shape[1]
    C = num_classes

    priors = priors.astype(jnp.float32)                                   # (P,4) center form

    # Pad the prior axis to a multiple of 128: lane-aligned blocks everywhere.
    P_pad = ((P + 127) // 128) * 128
    if P_pad != P:
        # TODO(synk): padding predictions costs one extra XLA pass; ideally the model
        # emits a 128-aligned prior grid so this branch never triggers.
        padp = P_pad - P
        far = jnp.concatenate([jnp.full((padp, 2), 2.0, jnp.float32),
                               jnp.full((padp, 2), 1e-3, jnp.float32)], axis=1)
        priors = jnp.concatenate([priors, far], axis=0)
        loc_data = jnp.concatenate(
            [loc_data, jnp.zeros((B, padp, 4), loc_data.dtype)], axis=1)
        conf_data = jnp.concatenate(
            [conf_data, jnp.zeros((B, padp, C), conf_data.dtype)], axis=1)
        landm_data = jnp.concatenate(
            [landm_data, jnp.zeros((B, padp, 10), landm_data.dtype)], axis=1)
    N = B * P_pad

    priors_point = jnp.concatenate(
        [priors[:, :2] - priors[:, 2:] / 2.0, priors[:, :2] + priors[:, 2:] / 2.0], axis=1)
    pri = jnp.concatenate([priors.T, priors_point.T], axis=0)             # (8, P_pad)

    tgt = targets.astype(jnp.float32)                                     # (B, NOBJ, 15)
    tgt16 = jnp.concatenate([tgt, jnp.zeros((B, NOBJ, 1), jnp.float32)], axis=-1)
    tgtT16 = jnp.transpose(tgt16, (0, 2, 1))                              # (B, 16, NOBJ) tiny

    vcap = _vmem_capacity_bytes()
    est1 = 12 * NOBJ * P_pad * 4 + 6 * 16 * P_pad * 4
    k1_vmem = int(min(vcap * 3 // 4, max(32 * 1024 * 1024, 2 * est1)))

    # Kernel 1: lane-dense (16, B*P_pad) target slab, one batch per grid step.
    enc = pl.pallas_call(
        functools.partial(_match_encode_kernel, threshold=overlap_thresh),
        grid=(B,),
        in_specs=[
            pl.BlockSpec((1, NOBJ, 16), lambda b: (b, 0, 0)),
            pl.BlockSpec((1, 16, NOBJ), lambda b: (b, 0, 0)),
            pl.BlockSpec((8, P_pad), lambda b: (0, 0)),
        ],
        out_specs=pl.BlockSpec((16, P_pad), lambda b: (0, b)),
        out_shape=jax.ShapeDtypeStruct((16, N), jnp.float32),
        compiler_params=pltpu.CompilerParams(
            dimension_semantics=("parallel",), vmem_limit_bytes=k1_vmem),
    )(tgt16, tgtT16, pri)

    label_row = enc[14:15, :]                   # (1, N) matched labels in {-1, 0, 1}
    conf_t = label_row.reshape(B, P_pad)
    pos = conf_t != 0.0                         # all positives

    tile_n = _pick_tile_n(N)
    grid_n = N // tile_n

    # Only remaining (small) transpose: class axis must be sublanes for the
    # lane-dense CE row.  loc/landm stay in their native layout (see kernel 3).
    confT = jnp.transpose(conf_data.reshape(N, C)).astype(jnp.float32)    # (C, N)

    # Kernel 2: per-prior CE, tiled lane-dense over N (megacore-splittable).
    ce_row = pl.pallas_call(
        _conf_ce_kernel,
        grid=(grid_n,),
        in_specs=[pl.BlockSpec((C, tile_n), lambda i: (0, i)),
                  pl.BlockSpec((1, tile_n), lambda i: (0, i))],
        out_specs=pl.BlockSpec((1, tile_n), lambda i: (0, i)),
        out_shape=jax.ShapeDtypeStruct((1, N), jnp.float32),
        compiler_params=pltpu.CompilerParams(dimension_semantics=("parallel",)),
    )(confT, label_row)

    # Hard negative mining: top_k + per-row k-th value threshold (no argsort/scatter).
    ce_bp = ce_row.reshape(B, P_pad)
    mine = jnp.where(pos, 0.0, ce_bp)           # positives excluded from ranking
    if P_pad != P:
        valid = (jnp.arange(P_pad) < P)[None, :]
        mine = jnp.where(valid, mine, -1.0)     # padded priors rank below everything
    num_pos = jnp.sum(pos.astype(jnp.int32), axis=1, keepdims=True)
    num_neg = jnp.minimum(negpos_ratio * num_pos, P - 1)
    if max_hard_negatives is not None:
        k_cap = int(max_hard_negatives)
    else:
        try:
            k_cap = int(jnp.max(num_neg))       # eager: exact per-batch cap
        except Exception:                       # traced under jit: safe fallback
            k_cap = P - 1
    k_cap = max(1, min(k_cap, P_pad - 1))
    topv, _ = lax.top_k(mine, k_cap)
    kth = jnp.take_along_axis(topv, jnp.clip(num_neg, 1, k_cap) - 1, axis=1)
    neg = (mine > kth) & (num_neg > 0)
    sel_row = (pos | neg).reshape(1, N).astype(jnp.float32)

    # Kernel 3 inputs: native prediction layout, zero extra HBM passes.
    loc_flat = loc_data.reshape(N, 4).astype(jnp.float32)
    landm_flat = landm_data.reshape(N, 10).astype(jnp.float32)

    ncore = 2 if (grid_n >= 2 and grid_n % 2 == 0) else 1
    steps = grid_n // ncore
    k3_vmem = int(min(vcap * 3 // 4, 48 * 1024 * 1024))

    sums = pl.pallas_call(
        _final_loss_kernel,
        grid=(ncore, steps),
        in_specs=[pl.BlockSpec((tile_n, 4), lambda c, i, s=steps: (c * s + i, 0)),
                  pl.BlockSpec((tile_n, 10), lambda c, i, s=steps: (c * s + i, 0)),
                  pl.BlockSpec((16, tile_n), lambda c, i, s=steps: (0, c * s + i)),
                  pl.BlockSpec((1, tile_n), lambda c, i, s=steps: (0, c * s + i)),
                  pl.BlockSpec((1, tile_n), lambda c, i, s=steps: (0, c * s + i))],
        out_specs=pl.BlockSpec((1, 8, 128), lambda c, i: (c, 0, 0)),
        out_shape=jax.ShapeDtypeStruct((ncore, 8, 128), jnp.float32),
        scratch_shapes=[pltpu.VMEM((8, 128), jnp.float32)],
        compiler_params=pltpu.CompilerParams(
            dimension_semantics=("parallel", "arbitrary"), vmem_limit_bytes=k3_vmem),
    )(loc_flat, landm_flat, enc, ce_row, sel_row)

    tot = jnp.sum(sums, axis=0)                 # combine the per-core partials
    loss_l_sum = tot[0, 0]
    loss_c_sum = tot[1, 0]
    loss_landm_sum = tot[2, 0]
    n = jnp.maximum(tot[3, 0], 1.0)
    n1 = jnp.maximum(tot[4, 0], 1.0)
    return loss_l_sum / n, loss_c_sum / n, loss_landm_sum / n1


if __name__ == "__main__":
    B, P, NOBJ, C = 2, 128, 8, 2

    # Deterministic priors: 8x8 grid of centers, 2 anchor sizes -> 128 priors (cx,cy,w,h)
    fm = 8
    cgrid = (jnp.arange(fm, dtype=jnp.float32) + 0.5) / fm
    gy, gx = jnp.meshgrid(cgrid, cgrid, indexing="ij")
    centers = jnp.stack([gx.ravel(), gy.ravel()], axis=-1)                  # (64, 2)
    priors = jnp.concatenate(
        [jnp.concatenate([centers, jnp.full((64, 2), s, jnp.float32)], axis=-1)
         for s in (0.15, 0.3)], axis=0)                                      # (128, 4)

    key = jax.random.PRNGKey(0)
    k1, k2, k3, k4, k5 = jax.random.split(key, 5)

    # Ground truth: jittered copies of selected priors (point form) so positives exist.
    sel_idx = (jnp.arange(B * NOBJ) * 11 + 3) % P
    priors_point = jnp.concatenate(
        [priors[:, :2] - priors[:, 2:] / 2.0, priors[:, :2] + priors[:, 2:] / 2.0], axis=1)
    base = priors_point[sel_idx].reshape(B, NOBJ, 4)
    boxes_gt = jnp.clip(
        base + 0.02 * jax.random.uniform(k1, (B, NOBJ, 4), minval=-1.0, maxval=1.0), 0.0, 1.0)
    landms_gt = jax.random.uniform(k2, (B, NOBJ, 10))
    labels_gt = jnp.ones((B, NOBJ, 1), jnp.float32).at[:, 0, :].set(-1.0)   # one no-landmark face
    targets = jnp.concatenate([boxes_gt, landms_gt, labels_gt], axis=-1)    # (B, NOBJ, 15)

    loc_pred = 0.1 * jax.random.normal(k3, (B, P, 4), jnp.float32)
    conf_pred = jax.random.normal(k4, (B, P, C), jnp.float32)
    landm_pred = 0.1 * jax.random.normal(k5, (B, P, 10), jnp.float32)

    loss_l, loss_c, loss_landm = multibox_loss(
        (loc_pred, conf_pred, landm_pred), targets, priors,
        num_classes=C, overlap_thresh=0.35, negpos_ratio=7)
    jax.block_until_ready((loss_l, loss_c, loss_landm))

    assert bool(jnp.isfinite(loss_l)) and bool(jnp.isfinite(loss_c)) and bool(jnp.isfinite(loss_landm))
    print("KERNEL_OK")
</pallas_src>

<mosaic_0001>
module attributes {stable_mosaic.version = 11 : i64} {
  func.func @_match_encode_kernel(%arg0: i32, %arg1: memref<1x8x16xf32, #tpu.memory_space<vmem>>, %arg2: memref<1x16x8xf32, #tpu.memory_space<vmem>>, %arg3: memref<8x128xf32, #tpu.memory_space<vmem>>, %arg4: memref<16x128xf32, #tpu.memory_space<vmem>>) attributes {dimension_semantics = [#tpu.dimension_semantics<parallel>], iteration_bounds = array<i64: 2>, scalar_prefetch = 0 : i64, scratch_operands = 0 : i64, tpu.core_type = #tpu.core_type<tc>, window_params = [{transform_indices = @transform_0, window_bounds = array<i64: 1, 8, 16>}, {transform_indices = @transform_1, window_bounds = array<i64: 1, 16, 8>}, {pipeline_mode = #tpu.pipeline_mode<synchronous>, transform_indices = @transform_2, window_bounds = array<i64: 8, 128>}, {transform_indices = @transform_3, window_bounds = array<i64: 16, 128>}]} {
    %c0 = arith.constant 0 : index
    %c0_0 = arith.constant 0 : index
    %c0_1 = arith.constant 0 : index
    %0 = vector.load %arg1[%c0, %c0_0, %c0_1] : memref<1x8x16xf32, #tpu.memory_space<vmem>>, vector<1x8x16xf32>
    %1 = vector.shape_cast %0 : vector<1x8x16xf32> to vector<8x16xf32>
    %c0_2 = arith.constant 0 : index
    %c0_3 = arith.constant 0 : index
    %c0_4 = arith.constant 0 : index
    %2 = vector.load %arg2[%c0_2, %c0_3, %c0_4] : memref<1x16x8xf32, #tpu.memory_space<vmem>>, vector<1x16x8xf32>
    %3 = vector.shape_cast %2 : vector<1x16x8xf32> to vector<16x8xf32>
    %c0_5 = arith.constant 0 : index
    %c0_6 = arith.constant 0 : index
    %4 = vector.load %arg3[%c0_5, %c0_6] : memref<8x128xf32, #tpu.memory_space<vmem>>, vector<1x128xf32>
    %c1 = arith.constant 1 : index
    %c0_7 = arith.constant 0 : index
    %5 = vector.load %arg3[%c1, %c0_7] : memref<8x128xf32, #tpu.memory_space<vmem>>, vector<1x128xf32>
    %c2 = arith.constant 2 : index
    %c0_8 = arith.constant 0 : index
    %6 = vector.load %arg3[%c2, %c0_8] : memref<8x128xf32, #tpu.memory_space<vmem>>, vector<1x128xf32>
    %c3 = arith.constant 3 : index
    %c0_9 = arith.constant 0 : index
    %7 = vector.load %arg3[%c3, %c0_9] : memref<8x128xf32, #tpu.memory_space<vmem>>, vector<1x128xf32>
    %c4 = arith.constant 4 : index
    %c0_10 = arith.constant 0 : index
    %8 = vector.load %arg3[%c4, %c0_10] : memref<8x128xf32, #tpu.memory_space<vmem>>, vector<1x128xf32>
    %c5 = arith.constant 5 : index
    %c0_11 = arith.constant 0 : index
    %9 = vector.load %arg3[%c5, %c0_11] : memref<8x128xf32, #tpu.memory_space<vmem>>, vector<1x128xf32>
    %c6 = arith.constant 6 : index
    %c0_12 = arith.constant 0 : index
    %10 = vector.load %arg3[%c6, %c0_12] : memref<8x128xf32, #tpu.memory_space<vmem>>, vector<1x128xf32>
    %c7 = arith.constant 7 : index
    %c0_13 = arith.constant 0 : index
    %11 = vector.load %arg3[%c7, %c0_13] : memref<8x128xf32, #tpu.memory_space<vmem>>, vector<1x128xf32>
    %12 = vector.extract_strided_slice %1 {offsets = [0, 0], sizes = [8, 1], strides = [1, 1]} : vector<8x16xf32> to vector<8x1xf32>
    %13 = vector.extract_strided_slice %1 {offsets = [0, 1], sizes = [8, 1], strides = [1, 1]} : vector<8x16xf32> to vector<8x1xf32>
    %14 = vector.extract_strided_slice %1 {offsets = [0, 2], sizes = [8, 1], strides = [1, 1]} : vector<8x16xf32> to vector<8x1xf32>
    %15 = vector.extract_strided_slice %1 {offsets = [0, 3], sizes = [8, 1], strides = [1, 1]} : vector<8x16xf32> to vector<8x1xf32>
    %16 = vector.broadcast %14 : vector<8x1xf32> to vector<8x128xf32>
    %17 = vector.broadcast %10 : vector<1x128xf32> to vector<8x128xf32>
    %18 = arith.minimumf %16, %17 : vector<8x128xf32>
    %19 = vector.broadcast %12 : vector<8x1xf32> to vector<8x128xf32>
    %20 = vector.broadcast %8 : vector<1x128xf32> to vector<8x128xf32>
    %21 = arith.maximumf %19, %20 : vector<8x128xf32>
    %22 = arith.subf %18, %21 : vector<8x128xf32>
    %cst = arith.constant 0.000000e+00 : f32
    %23 = vector.broadcast %cst : f32 to vector<8x128xf32>
    %24 = arith.maximumf %22, %23 : vector<8x128xf32>
    %25 = vector.broadcast %15 : vector<8x1xf32> to vector<8x128xf32>
    %26 = vector.broadcast %11 : vector<1x128xf32> to vector<8x128xf32>
    %27 = arith.minimumf %25, %26 : vector<8x128xf32>
    %28 = vector.broadcast %13 : vector<8x1xf32> to vector<8x128xf32>
    %29 = vector.broadcast %9 : vector<1x128xf32> to vector<8x128xf32>
    %30 = arith.maximumf %28, %29 : vector<8x128xf32>
    %31 = arith.subf %27, %30 : vector<8x128xf32>
    %cst_14 = arith.constant 0.000000e+00 : f32
    %32 = vector.broadcast %cst_14 : f32 to vector<8x128xf32>
    %33 = arith.maximumf %31, %32 : vector<8x128xf32>
    %34 = arith.mulf %24, %33 : vector<8x128xf32>
    %35 = arith.subf %14, %12 : vector<8x1xf32>
    %36 = arith.subf %15, %13 : vector<8x1xf32>
    %37 = arith.mulf %35, %36 : vector<8x1xf32>
    %38 = arith.subf %10, %8 : vector<1x128xf32>
    %39 = arith.subf %11, %9 : vector<1x128xf32>
    %40 = arith.mulf %38, %39 : vector<1x128xf32>
    %41 = vector.broadcast %37 : vector<8x1xf32> to vector<8x128xf32>
    %42 = vector.broadcast %40 : vector<1x128xf32> to vector<8x128xf32>
    %43 = arith.addf %41, %42 : vector<8x128xf32>
    %44 = arith.subf %43, %34 : vector<8x128xf32>
    %cst_15 = arith.constant 9.99999996E-13 : f32
    %45 = vector.broadcast %cst_15 : f32 to vector<8x128xf32>
    %46 = arith.maximumf %44, %45 : vector<8x128xf32>
    %47 = arith.divf %34, %46 : vector<8x128xf32>
    %48 = tpu.iota {dimensions = array<i32: 1>} : vector<8x128xi32>
    %49 = tpu.iota {dimensions = array<i32: 0>} : vector<8x128xi32>
    %cst_16 = arith.constant dense<0xFF800000> : vector<8xf32>
    %50 = vector.multi_reduction <maximumf>, %47, %cst_16 [1] : vector<8x128xf32> to vector<8xf32>
    %51 = vector.shape_cast %50 : vector<8xf32> to vector<8x1xf32>
    %52 = vector.broadcast %51 : vector<8x1xf32> to vector<8x128xf32>
    %53 = arith.cmpf oeq, %47, %52 : vector<8x128xf32>
    %c128_i32 = arith.constant 128 : i32
    %54 = vector.broadcast %c128_i32 : i32 to vector<8x128xi32>
    %55 = arith.select %53, %48, %54 : vector<8x128xi1>, vector<8x128xi32>
    %cst_17 = arith.constant dense<2147483647> : vector<8xi32>
    %56 = vector.multi_reduction <minsi>, %55, %cst_17 [1] : vector<8x128xi32> to vector<8xi32>
    %57 = vector.shape_cast %56 : vector<8xi32> to vector<8x1xi32>
    %cst_18 = arith.constant 2.000000e-01 : f32
    %58 = vector.broadcast %cst_18 : f32 to vector<8x1xf32>
    %59 = arith.cmpf oge, %51, %58 : vector<8x1xf32>
    %60 = arith.extui %59 : vector<8x1xi1> to vector<8x1xi32>
    %61 = vector.shape_cast %60 : vector<8x1xi32> to vector<1x8x1xi32>
    %cst_19 = arith.constant dense<-2147483648> : vector<1xi32>
    %62 = vector.multi_reduction <maxsi>, %61, %cst_19 [1, 2] : vector<1x8x1xi32> to vector<1xi32>
    %63 = vector.shape_cast %62 : vector<1xi32> to vector<1x1x1xi32>
    %64 = vector.extract %63[0, 0, 0] : i32 from vector<1x1x1xi32>
    %c0_i32 = arith.constant 0 : i32
    %65 = arith.cmpi sgt, %64, %c0_i32 : i32
    %cst_20 = arith.constant dense<0xFF800000> : vector<128xf32>
    %66 = vector.multi_reduction <maximumf>, %47, %cst_20 [0] : vector<8x128xf32> to vector<128xf32>
    %67 = vector.shape_cast %66 : vector<128xf32> to vector<1x128xf32>
    %68 = vector.broadcast %67 : vector<1x128xf32> to vector<8x128xf32>
    %69 = arith.cmpf oeq, %47, %68 : vector<8x128xf32>
    %c8_i32 = arith.constant 8 : i32
    %70 = vector.broadcast %c8_i32 : i32 to vector<8x128xi32>
    %71 = arith.select %69, %49, %70 : vector<8x128xi1>, vector<8x128xi32>
    %cst_21 = arith.constant dense<2147483647> : vector<128xi32>
    %72 = vector.multi_reduction <minsi>, %71, %cst_21 [0] : vector<8x128xi32> to vector<128xi32>
    %73 = vector.shape_cast %72 : vector<128xi32> to vector<1x128xi32>
    %74 = vector.broadcast %57 : vector<8x1xi32> to vector<8x128xi32>
    %75 = arith.cmpi eq, %48, %74 : vector<8x128xi32>
    %76 = vector.broadcast %59 : vector<8x1xi1> to vector<8x128xi1>
    %77 = arith.andi %75, %76 : vector<8x128xi1>
    %78 = arith.extui %77 : vector<8x128xi1> to vector<8x128xi32>
    %cst_22 = arith.constant dense<-2147483648> : vector<128xi32>
    %79 = vector.multi_reduction <maxsi>, %78, %cst_22 [0] : vector<8x128xi32> to vector<128xi32>
    %80 = vector.shape_cast %79 : vector<128xi32> to vector<1x128xi32>
    %c0_i32_23 = arith.constant 0 : i32
    %81 = vector.broadcast %c0_i32_23 : i32 to vector<1x128xi32>
    %82 = arith.cmpi sgt, %80, %81 : vector<1x128xi32>
    %cst_24 = arith.constant 2.000000e+00 : f32
    %83 = vector.broadcast %cst_24 : f32 to vector<1x128xf32>
    %84 = arith.select %82, %83, %67 : vector<1x128xi1>, vector<1x128xf32>
    %c-1_i32 = arith.constant -1 : i32
    %85 = vector.broadcast %c-1_i32 : i32 to vector<8x128xi32>
    %86 = arith.select %75, %49, %85 : vector<8x128xi1>, vector<8x128xi32>
    %cst_25 = arith.constant dense<-2147483648> : vector<128xi32>
    %87 = vector.multi_reduction <maxsi>, %86, %cst_25 [0] : vector<8x128xi32> to vector<128xi32>
    %88 = vector.shape_cast %87 : vector<128xi32> to vector<1x128xi32>
    %c0_i32_26 = arith.constant 0 : i32
    %89 = vector.broadcast %c0_i32_26 : i32 to vector<1x128xi32>
    %90 = arith.cmpi sge, %88, %89 : vector<1x128xi32>
    %91 = arith.select %90, %88, %73 : vector<1x128xi1>, vector<1x128xi32>
    %92 = vector.extract_strided_slice %3 {offsets = [0, 0], sizes = [16, 1], strides = [1, 1]} : vector<16x8xf32> to vector<16x1xf32>
    %93 = vector.shape_cast %92 : vector<16x1xf32> to vector<16x1xf32>
    %94 = vector.broadcast %93 : vector<16x1xf32> to vector<16x128xf32>
    %c1_i32 = arith.constant 1 : i32
    %95 = vector.broadcast %c1_i32 : i32 to vector<1x128xi32>
    %96 = arith.cmpi eq, %91, %95 : vector<1x128xi32>
    %97 = vector.extract_strided_slice %3 {offsets = [0, 1], sizes = [16, 1], strides = [1, 1]} : vector<16x8xf32> to vector<16x1xf32>
    %98 = vector.shape_cast %96 : vector<1x128xi1> to vector<1x128xi1>
    %99 = vector.broadcast %98 : vector<1x128xi1> to vector<16x128xi1>
    %100 = vector.shape_cast %97 : vector<16x1xf32> to vector<16x1xf32>
    %101 = vector.broadcast %100 : vector<16x1xf32> to vector<16x128xf32>
    %102 = arith.select %99, %101, %94 : vector<16x128xi1>, vector<16x128xf32>
    %c2_i32 = arith.constant 2 : i32
    %103 = vector.broadcast %c2_i32 : i32 to vector<1x128xi32>
    %104 = arith.cmpi eq, %91, %103 : vector<1x128xi32>
    %105 = vector.extract_strided_slice %3 {offsets = [0, 2], sizes = [16, 1], strides = [1, 1]} : vector<16x8xf32> to vector<16x1xf32>
    %106 = vector.shape_cast %104 : vector<1x128xi1> to vector<1x128xi1>
    %107 = vector.broadcast %106 : vector<1x128xi1> to vector<16x128xi1>
    %108 = vector.shape_cast %105 : vector<16x1xf32> to vector<16x1xf32>
    %109 = vector.broadcast %108 : vector<16x1xf32> to vector<16x128xf32>
    %110 = arith.select %107, %109, %102 : vector<16x128xi1>, vector<16x128xf32>
    %c3_i32 = arith.constant 3 : i32
    %111 = vector.broadcast %c3_i32 : i32 to vector<1x128xi32>
    %112 = arith.cmpi eq, %91, %111 : vector<1x128xi32>
    %113 = vector.extract_strided_slice %3 {offsets = [0, 3], sizes = [16, 1], strides = [1, 1]} : vector<16x8xf32> to vector<16x1xf32>
    %114 = vector.shape_cast %112 : vector<1x128xi1> to vector<1x128xi1>
    %115 = vector.broadcast %114 : vector<1x128xi1> to vector<16x128xi1>
    %116 = vector.shape_cast %113 : vector<16x1xf32> to vector<16x1xf32>
    %117 = vector.broadcast %116 : vector<16x1xf32> to vector<16x128xf32>
    %118 = arith.select %115, %117, %110 : vector<16x128xi1>, vector<16x128xf32>
    %c4_i32 = arith.constant 4 : i32
    %119 = vector.broadcast %c4_i32 : i32 to vector<1x128xi32>
    %120 = arith.cmpi eq, %91, %119 : vector<1x128xi32>
    %121 = vector.extract_strided_slice %3 {offsets = [0, 4], sizes = [16, 1], strides = [1, 1]} : vector<16x8xf32> to vector<16x1xf32>
    %122 = vector.shape_cast %120 : vector<1x128xi1> to vector<1x128xi1>
    %123 = vector.broadcast %122 : vector<1x128xi1> to vector<16x128xi1>
    %124 = vector.shape_cast %121 : vector<16x1xf32> to vector<16x1xf32>
    %125 = vector.broadcast %124 : vector<16x1xf32> to vector<16x128xf32>
    %126 = arith.select %123, %125, %118 : vector<16x128xi1>, vector<16x128xf32>
    %c5_i32 = arith.constant 5 : i32
    %127 = vector.broadcast %c5_i32 : i32 to vector<1x128xi32>
    %128 = arith.cmpi eq, %91, %127 : vector<1x128xi32>
    %129 = vector.extract_strided_slice %3 {offsets = [0, 5], sizes = [16, 1], strides = [1, 1]} : vector<16x8xf32> to vector<16x1xf32>
    %130 = vector.shape_cast %128 : vector<1x128xi1> to vector<1x128xi1>
    %131 = vector.broadcast %130 : vector<1x128xi1> to vector<16x128xi1>
    %132 = vector.shape_cast %129 : vector<16x1xf32> to vector<16x1xf32>
    %133 = vector.broadcast %132 : vector<16x1xf32> to vector<16x128xf32>
    %134 = arith.select %131, %133, %126 : vector<16x128xi1>, vector<16x128xf32>
    %c6_i32 = arith.constant 6 : i32
    %135 = vector.broadcast %c6_i32 : i32 to vector<1x128xi32>
    %136 = arith.cmpi eq, %91, %135 : vector<1x128xi32>
    %137 = vector.extract_strided_slice %3 {offsets = [0, 6], sizes = [16, 1], strides = [1, 1]} : vector<16x8xf32> to vector<16x1xf32>
    %138 = vector.shape_cast %136 : vector<1x128xi1> to vector<1x128xi1>
    %139 = vector.broadcast %138 : vector<1x128xi1> to vector<16x128xi1>
    %140 = vector.shape_cast %137 : vector<16x1xf32> to vector<16x1xf32>
    %141 = vector.broadcast %140 : vector<16x1xf32> to vector<16x128xf32>
    %142 = arith.select %139, %141, %134 : vector<16x128xi1>, vector<16x128xf32>
    %c7_i32 = arith.constant 7 : i32
    %143 = vector.broadcast %c7_i32 : i32 to vector<1x128xi32>
    %144 = arith.cmpi eq, %91, %143 : vector<1x128xi32>
    %145 = vector.extract_strided_slice %3 {offsets = [0, 7], sizes = [16, 1], strides = [1, 1]} : vector<16x8xf32> to vector<16x1xf32>
    %146 = vector.shape_cast %144 : vector<1x128xi1> to vector<1x128xi1>
    %147 = vector.broadcast %146 : vector<1x128xi1> to vector<16x128xi1>
    %148 = vector.shape_cast %145 : vector<16x1xf32> to vector<16x1xf32>
    %149 = vector.broadcast %148 : vector<16x1xf32> to vector<16x128xf32>
    %150 = arith.select %147, %149, %142 : vector<16x128xi1>, vector<16x128xf32>
    %151 = tpu.reciprocal %6 {approx = true} : vector<1x128xf32> -> vector<1x128xf32>
    %152 = tpu.reciprocal %7 {approx = true} : vector<1x128xf32> -> vector<1x128xf32>
    %cst_27 = arith.constant 1.000000e+01 : f32
    %153 = vector.broadcast %cst_27 : f32 to vector<1x128xf32>
    %154 = arith.mulf %151, %153 : vector<1x128xf32>
    %cst_28 = arith.constant 1.000000e+01 : f32
    %155 = vector.broadcast %cst_28 : f32 to vector<1x128xf32>
    %156 = arith.mulf %152, %155 : vector<1x128xf32>
    %157 = vector.extract_strided_slice %150 {offsets = [0, 0], sizes = [1, 128], strides = [1, 1]} : vector<16x128xf32> to vector<1x128xf32>
    %158 = vector.extract_strided_slice %150 {offsets = [1, 0], sizes = [1, 128], strides = [1, 1]} : vector<16x128xf32> to vector<1x128xf32>
    %159 = vector.extract_strided_slice %150 {offsets = [2, 0], sizes = [1, 128], strides = [1, 1]} : vector<16x128xf32> to vector<1x128xf32>
    %160 = vector.extract_strided_slice %150 {offsets = [3, 0], sizes = [1, 128], strides = [1, 1]} : vector<16x128xf32> to vector<1x128xf32>
    %161 = arith.addf %157, %159 : vector<1x128xf32>
    %cst_29 = arith.constant 5.000000e-01 : f32
    %162 = vector.broadcast %cst_29 : f32 to vector<1x128xf32>
    %163 = arith.mulf %161, %162 : vector<1x128xf32>
    %164 = arith.subf %163, %4 : vector<1x128xf32>
    %165 = arith.mulf %164, %154 : vector<1x128xf32>
    %166 = arith.addf %158, %160 : vector<1x128xf32>
    %cst_30 = arith.constant 5.000000e-01 : f32
    %167 = vector.broadcast %cst_30 : f32 to vector<1x128xf32>
    %168 = arith.mulf %166, %167 : vector<1x128xf32>
    %169 = arith.subf %168, %5 : vector<1x128xf32>
    %170 = arith.mulf %169, %156 : vector<1x128xf32>
    %171 = arith.subf %159, %157 : vector<1x128xf32>
    %cst_31 = arith.constant 9.99999993E-9 : f32
    %172 = vector.broadcast %cst_31 : f32 to vector<1x128xf32>
    %173 = arith.maximumf %171, %172 : vector<1x128xf32>
    %174 = arith.mulf %173, %151 : vector<1x128xf32>
    %175 = math.log %174 : vector<1x128xf32>
    %cst_32 = arith.constant 5.000000e+00 : f32
    %176 = vector.broadcast %cst_32 : f32 to vector<1x128xf32>
    %177 = arith.mulf %175, %176 : vector<1x128xf32>
    %178 = arith.subf %160, %158 : vector<1x128xf32>
    %cst_33 = arith.constant 9.99999993E-9 : f32
    %179 = vector.broadcast %cst_33 : f32 to vector<1x128xf32>
    %180 = arith.maximumf %178, %179 : vector<1x128xf32>
    %181 = arith.mulf %180, %152 : vector<1x128xf32>
    %182 = math.log %181 : vector<1x128xf32>
    %cst_34 = arith.constant 5.000000e+00 : f32
    %183 = vector.broadcast %cst_34 : f32 to vector<1x128xf32>
    %184 = arith.mulf %182, %183 : vector<1x128xf32>
    %185 = vector.extract_strided_slice %150 {offsets = [4, 0], sizes = [1, 128], strides = [1, 1]} : vector<16x128xf32> to vector<1x128xf32>
    %186 = vector.extract_strided_slice %150 {offsets = [5, 0], sizes = [1, 128], strides = [1, 1]} : vector<16x128xf32> to vector<1x128xf32>
    %187 = arith.subf %185, %4 : vector<1x128xf32>
    %188 = arith.mulf %187, %154 : vector<1x128xf32>
    %189 = arith.subf %186, %5 : vector<1x128xf32>
    %190 = arith.mulf %189, %156 : vector<1x128xf32>
    %191 = vector.extract_strided_slice %150 {offsets = [6, 0], sizes = [1, 128], strides = [1, 1]} : vector<16x128xf32> to vector<1x128xf32>
    %192 = vector.extract_strided_slice %150 {offsets = [7, 0], sizes = [1, 128], strides = [1, 1]} : vector<16x128xf32> to vector<1x128xf32>
    %193 = arith.subf %191, %4 : vector<1x128xf32>
    %194 = arith.mulf %193, %154 : vector<1x128xf32>
    %195 = arith.subf %192, %5 : vector<1x128xf32>
    %196 = arith.mulf %195, %156 : vector<1x128xf32>
    %197 = vector.extract_strided_slice %150 {offsets = [8, 0], sizes = [1, 128], strides = [1, 1]} : vector<16x128xf32> to vector<1x128xf32>
    %198 = vector.extract_strided_slice %150 {offsets = [9, 0], sizes = [1, 128], strides = [1, 1]} : vector<16x128xf32> to vector<1x128xf32>
    %199 = arith.subf %197, %4 : vector<1x128xf32>
    %200 = arith.mulf %199, %154 : vector<1x128xf32>
    %201 = arith.subf %198, %5 : vector<1x128xf32>
    %202 = arith.mulf %201, %156 : vector<1x128xf32>
    %203 = vector.extract_strided_slice %150 {offsets = [10, 0], sizes = [1, 128], strides = [1, 1]} : vector<16x128xf32> to vector<1x128xf32>
    %204 = vector.extract_strided_slice %150 {offsets = [11, 0], sizes = [1, 128], strides = [1, 1]} : vector<16x128xf32> to vector<1x128xf32>
    %205 = arith.subf %203, %4 : vector<1x128xf32>
    %206 = arith.mulf %205, %154 : vector<1x128xf32>
    %207 = arith.subf %204, %5 : vector<1x128xf32>
    %208 = arith.mulf %207, %156 : vector<1x128xf32>
    %209 = vector.extract_strided_slice %150 {offsets = [12, 0], sizes = [1, 128], strides = [1, 1]} : vector<16x128xf32> to vector<1x128xf32>
    %210 = vector.extract_strided_slice %150 {offsets = [13, 0], sizes = [1, 128], strides = [1, 1]} : vector<16x128xf32> to vector<1x128xf32>
    %211 = arith.subf %209, %4 : vector<1x128xf32>
    %212 = arith.mulf %211, %154 : vector<1x128xf32>
    %213 = arith.subf %210, %5 : vector<1x128xf32>
    %214 = arith.mulf %213, %156 : vector<1x128xf32>
    %215 = vector.extract_strided_slice %150 {offsets = [14, 0], sizes = [1, 128], strides = [1, 1]} : vector<16x128xf32> to vector<1x128xf32>
    %cst_35 = arith.constant 3.500000e-01 : f32
    %216 = vector.broadcast %cst_35 : f32 to vector<1x128xf32>
    %217 = arith.cmpf olt, %84, %216 : vector<1x128xf32>
    %cst_36 = arith.constant 0.000000e+00 : f32
    %218 = vector.broadcast %cst_36 : f32 to vector<1x128xf32>
    %219 = arith.select %217, %218, %215 : vector<1x128xi1>, vector<1x128xf32>
    %cst_37 = arith.constant 0.000000e+00 : f32
    %220 = vector.broadcast %cst_37 : f32 to vector<1x128xf32>
    %221 = tpu.concatenate %165, %170, %177, %184, %188, %190, %194, %196, %200, %202, %206, %208, %212, %214, %219, %220 in 0 : vector<1x128xf32>, vector<1x128xf32>, vector<1x128xf32>, vector<1x128xf32>, vector<1x128xf32>, vector<1x128xf32>, vector<1x128xf32>, vector<1x128xf32>, vector<1x128xf32>, vector<1x128xf32>, vector<1x128xf32>, vector<1x128xf32>, vector<1x128xf32>, vector<1x128xf32>, vector<1x128xf32>, vector<1x128xf32> -> vector<16x128xf32>
    %cst_38 = arith.constant 0.000000e+00 : f32
    %222 = vector.broadcast %cst_38 : f32 to vector<16x128xf32>
    %223 = arith.select %65, %221, %222 : vector<16x128xf32>
    %c0_39 = arith.constant 0 : index
    %c0_40 = arith.constant 0 : index
    %224 = vector.load %arg4[%c0_39, %c0_40] : memref<16x128xf32, #tpu.memory_space<vmem>>, vector<16x128xf32>
    tpu.vector_store %arg4[%c0_39, %c0_40], %223 {strides = array<i32>} : memref<16x128xf32, #tpu.memory_space<vmem>>, vector<16x128xf32>,
    return
  }
  func.func @transform_0(%arg0: i32) -> (i32, i32, i32) {
    %c0_i32 = arith.constant 0 : i32
    %c0_i32_0 = arith.constant 0 : i32
    %c0_i32_1 = arith.constant 0 : i32
    return %arg0, %c0_i32, %c0_i32_0 : i32, i32, i32
  }
  func.func @transform_1(%arg0: i32) -> (i32, i32, i32) {
    %c0_i32 = arith.constant 0 : i32
    %c0_i32_0 = arith.constant 0 : i32
    %c0_i32_1 = arith.constant 0 : i32
    return %arg0, %c0_i32, %c0_i32_0 : i32, i32, i32
  }
  func.func @transform_2(%arg0: i32) -> (i32, i32) {
    %c0_i32 = arith.constant 0 : i32
    %c0_i32_0 = arith.constant 0 : i32
    %c0_i32_1 = arith.constant 0 : i32
    return %c0_i32, %c0_i32_0 : i32, i32
  }
  func.func @transform_3(%arg0: i32) -> (i32, i32) {
    %c0_i32 = arith.constant 0 : i32
    %c0_i32_0 = arith.constant 0 : i32
    return %c0_i32, %arg0 : i32, i32
  }
}

</mosaic_0001>

<llo_original>
// kernel: tpu_custom_call.1
$region0: #{tpu_custom_call.1}
  #allocation0 [shape = 'u32[]', space=smem, size = 0x4, offset = 0x4, fixed_abs, tag = 'smem constant byte address 0x4 - core index']
  #allocation1 [shape = 'u32[144,128]{1,0:T(1,128)}', space=vmem, size = 0x12000, scoped, tag = 'internal scratch']
  %s0 = inlined_call_operand.vmem [shape: f32[2,8,16], index: 0, kind: input, shape index: {}]
  %s1 = inlined_call_operand.vmem [shape: f32[2,16,8], index: 1, kind: input, shape index: {}]
  %s2 = inlined_call_operand.vmem [shape: f32[8,128], index: 2, kind: input, shape index: {}]
  %s3 = inlined_call_operand.hbm [shape: f32[16,256], index: 3, kind: output, shape index: {}]
  %s4 = sld [smem:[#allocation0]]
  $region45: #{tpu_custom_call.1} parent=0
    _
  %s6 = ssub.s32 1, %s4
  %s7 = scalar_select 0, %s6, %s4
  $region1: #{tpu_custom_call.1} parent=0
    #allocation2 [shape = 'u8[16384]{0}', space=vmem, size = 0x4000, scoped, tag = 'output window, operand 0']
    #allocation3 [shape = 's32[2]{0}', space=sflag, size = 0x8, scoped, tag = 'scoped memory for tpu_custom_call.1']
    %8 = vsyncpa [#allocation3], 0
    %s9 = scalar_lea.sflag [#allocation3], 1
    %10 = vsyncpa %s9, 0
    loop: start=0, step=1, limit=4
    $region2: #{tpu_custom_call.1} parent=1 // loop_pre_header
      _
    $region3: #{tpu_custom_call.1} parent=1 // loop_header
      %s12 = sphi 0, %s16
      %p13 = scmp.ge.s32.totalorder %s12, 4
      %s22 = sphi 0, %s24
      %s25 = sphi 0, %s22
      %s26 = sphi 0, %s25
      %s42 = sphi 0, %s26
      %s48 = sphi 0, %s50
      %s51 = sphi 0, %s48
      %s52 = sphi 0, %s51
      %s68 = sphi 0, %s52
      %s72 = sphi 0, %s72
      %s74 = sphi 0, %s72
      %s75 = sphi 0, %s74
      %s89 = sphi 0, %s75
      %s95 = sphi 0, %s97
      %s98 = sphi 0, %s95
      %s99 = sphi 0, %s98
      %s115 = sphi 0, %s99
    $region4: #{tpu_custom_call.1} parent=1 // loop_header_branch
      %15 = sbr.rel (%p13) target = $region8
    $region5: #{tpu_custom_call.1} parent=1 // loop_body
      %s17 = ssub.s32 %s12, 1
      %s18 = ssub.s32 %s12, 2
      %s19 = sadd.s32 %s12, 1
      %s20 = ssub.s32 %s12, %s19
      %p21 = scmp.eq.s32.totalorder %s20, 0
      %s23 = sadd.s32 %s22, 1
      %s24 = scalar_select %p21, %s22, %s23
      %p27 = pneg %p21
      %p28 = scmp.eq.s32.totalorder %s12, 1
      %p29 = por %p27, %p28
      %p30 = scmp.ne.s32.totalorder %s22, %s25
      %p31 = scmp.eq.s32.totalorder %s12, 0
      %p32 = por %p30, %p31
      %p33 = scmp.ne.s32.totalorder %s22, %s25
      %p34 = scmp.eq.s32.totalorder %s17, 1
      %p35 = por %p33, %p34
      %p36 = scmp.ne.s32.totalorder %s25, %s26
      %p37 = scmp.eq.s32.totalorder %s17, 0
      %p38 = por %p36, %p37
      %p39 = scmp.ne.s32.totalorder %s25, %s26
      %p40 = scmp.eq.s32.totalorder %s18, 1
      %p41 = por %p39, %p40
      %p43 = scmp.ne.s32.totalorder %s26, %s42
      %p44 = scmp.eq.s32.totalorder %s18, 0
      %p45 = por %p43, %p44
      %s46 = ssub.s32 %s12, %s19
      %p47 = scmp.eq.s32.totalorder %s46, 0
      %s49 = sadd.s32 %s48, 1
      %s50 = scalar_select %p47, %s48, %s49
      %p53 = pneg %p47
      %p54 = scmp.eq.s32.totalorder %s12, 1
      %p55 = por %p53, %p54
      %p56 = scmp.ne.s32.totalorder %s48, %s51
      %p57 = scmp.eq.s32.totalorder %s12, 0
      %p58 = por %p56, %p57
      %p59 = scmp.ne.s32.totalorder %s48, %s51
      %p60 = scmp.eq.s32.totalorder %s17, 1
      %p61 = por %p59, %p60
      %p62 = scmp.ne.s32.totalorder %s51, %s52
      %p63 = scmp.eq.s32.totalorder %s17, 0
      %p64 = por %p62, %p63
      %p65 = scmp.ne.s32.totalorder %s51, %s52
      %p66 = scmp.eq.s32.totalorder %s18, 1
      %p67 = por %p65, %p66
      %p69 = scmp.ne.s32.totalorder %s52, %s68
      %p70 = scmp.eq.s32.totalorder %s18, 0
      %p71 = por %p69, %p70
      %s73 = sadd.s32 %s72, 1
      %p76 = scmp.eq.s32.totalorder %s12, 1
      %p77 = scmp.ne.s32.totalorder %s72, %s74
      %p78 = scmp.eq.s32.totalorder %s12, 0
      %p79 = por %p77, %p78
      %p80 = scmp.ne.s32.totalorder %s72, %s74
      %p81 = scmp.eq.s32.totalorder %s17, 1
      %p82 = por %p80, %p81
      %p83 = scmp.ne.s32.totalorder %s74, %s75
      %p84 = scmp.eq.s32.totalorder %s17, 0
      %p85 = por %p83, %p84
      %p86 = scmp.ne.s32.totalorder %s74, %s75
      %p87 = scmp.eq.s32.totalorder %s18, 1
      %p88 = por %p86, %p87
      %p90 = scmp.ne.s32.totalorder %s75, %s89
      %p91 = scmp.eq.s32.totalorder %s18, 0
      %p92 = por %p90, %p91
      %s93 = ssub.s32 %s12, %s19
      %p94 = scmp.eq.s32.totalorder %s93, 0
      %s96 = sadd.s32 %s95, 1
      %s97 = scalar_select %p94, %s95, %s96
      %p100 = pneg %p94
      %p101 = scmp.eq.s32.totalorder %s12, 1
      %p102 = por %p100, %p101
      %p103 = scmp.ne.s32.totalorder %s95, %s98
      %p104 = scmp.eq.s32.totalorder %s12, 0
      %p105 = por %p103, %p104
      %p106 = scmp.ne.s32.totalorder %s95, %s98
      %p107 = scmp.eq.s32.totalorder %s17, 1
      %p108 = por %p106, %p107
      %p109 = scmp.ne.s32.totalorder %s98, %s99
      %p110 = scmp.eq.s32.totalorder %s17, 0
      %p111 = por %p109, %p110
      %p112 = scmp.ne.s32.totalorder %s98, %s99
      %p113 = scmp.eq.s32.totalorder %s18, 1
      %p114 = por %p112, %p113
      %p116 = scmp.ne.s32.totalorder %s99, %s115
      %p117 = scmp.eq.s32.totalorder %s18, 0
      %p118 = por %p116, %p117
      %p119 = scmp.le.s32.totalorder 1, %s12
      %p120 = scmp.lt.s32.totalorder %s12, 3
      %p121 = pnand %p119, %p120
      %p122 = pneg %p121
      // Predicated region
      $region9: #{tpu_custom_call.1} parent=5 // pred_check
        _
      $region10: #{tpu_custom_call.1} parent=5 // pred_check_branch
        %124 = sbr.rel (%p121) target = $region12
      $region11: #{tpu_custom_call.1} parent=5 // pred_region
        %s125 = ssub.s32 %s12, 1
        // Predicated region
        $region13: #{tpu_custom_call.1} parent=11 // pred_check
          %p126 = pneg %p85
        $region14: #{tpu_custom_call.1} parent=11 // pred_check_branch
          %128 = sbr.rel (%p126) target = $region16
        $region15: #{tpu_custom_call.1} parent=11 // pred_region
          _
        $region16: #{tpu_custom_call.1} parent=11 // pred_fallthru
          _
      $region12: #{tpu_custom_call.1} parent=5 // pred_fallthru
        _
      %p129 = scmp.lt.s32.totalorder %s12, 2
      // Predicated region
      $region17: #{tpu_custom_call.1} parent=5 // pred_check
        %p130 = pneg %p129
      $region18: #{tpu_custom_call.1} parent=5 // pred_check_branch
        %132 = sbr.rel (%p130) target = $region20
      $region19: #{tpu_custom_call.1} parent=5 // pred_region
        // Predicated region
        $region21: #{tpu_custom_call.1} parent=19 // pred_check
          %p133 = pneg %p32
        $region22: #{tpu_custom_call.1} parent=19 // pred_check_branch
          %135 = sbr.rel (%p133) target = $region24
        $region23: #{tpu_custom_call.1} parent=19 // pred_region
          %p136 = scmp.lt.s32.totalorder %s12, 1
          %s137 = scalar_select %p136, %s12, 1
          %s138 = smul.addr %s137, 8
          %s139 = scalar_lea.vmem %s0, %s138
        $region24: #{tpu_custom_call.1} parent=19 // pred_fallthru
          _
        // Predicated region
        $region25: #{tpu_custom_call.1} parent=19 // pred_check
          %p140 = pneg %p58
        $region26: #{tpu_custom_call.1} parent=19 // pred_check_branch
          %142 = sbr.rel (%p140) target = $region28
        $region27: #{tpu_custom_call.1} parent=19 // pred_region
          %p143 = scmp.lt.s32.totalorder %s12, 1
          %s144 = scalar_select %p143, %s12, 1
          %s145 = smul.addr %s144, 2
          %s146 = smul.addr %s145, 8
          %s147 = scalar_lea.vmem %s1, %s146
        $region28: #{tpu_custom_call.1} parent=19 // pred_fallthru
          _
      $region20: #{tpu_custom_call.1} parent=5 // pred_fallthru
        _
      %p148 = scmp.le.s32.totalorder 1, %s12
      %p149 = scmp.lt.s32.totalorder %s12, 3
      %p150 = pnand %p148, %p149
      %p151 = pneg %p150
      // Predicated region
      $region29: #{tpu_custom_call.1} parent=5 // pred_check
        _
      $region30: #{tpu_custom_call.1} parent=5 // pred_check_branch
        %153 = sbr.rel (%p150) target = $region32
      $region31: #{tpu_custom_call.1} parent=5 // pred_region
        %s154 = ssub.s32 %s12, 1
        %p155 = scmp.lt.s32.totalorder %s17, 1
        %s156 = scalar_select %p155, %s17, 1
        %s157 = smul.addr %s156, 8
        %s158 = scalar_lea.vmem %s0, %s157
        %p159 = pneg %p38
        %p160 = pneg %p35
        %p161 = scmp.lt.s32.totalorder %s17, 1
        %s162 = scalar_select %p161, %s17, 1
        %s163 = smul.addr %s162, 2
        %s164 = smul.addr %s163, 8
        %s165 = scalar_lea.vmem %s1, %s164
        %p166 = pneg %p64
        %p167 = pneg %p61
        %p168 = pneg %p85
        %p169 = pneg %p82
        %p170 = pneg %p111
        %p171 = pneg %p108
        %s172 = sand.u32 %s98, 1
        %s173 = scalar_lea.sflag [#allocation3], %s172
        %s174 = sand.u32 %s98, 1
        %s175 = smul.addr %s174, 16
        %s176 = scalar_lea.vmem [#allocation2], %s175
        %p177 = scmp.lt.s32.totalorder %s17, 1
        %s178 = scalar_select %p177, %s17, 1
        %s179 = smul.addr %s178, 8
        %s180 = scalar_lea.vmem %s0, %s179
        %p181 = scmp.lt.s32.totalorder %s17, 1
        %s182 = scalar_select %p181, %s17, 1
        %s183 = smul.addr %s182, 2
        %s184 = smul.addr %s183, 8
        %s185 = scalar_lea.vmem %s1, %s184
        %v186 = vld [vmem:[%s180] sm:$0xff]
        %v187 = vld [vmem:[%s185] sm:$0xff]
        %v188 = vld [vmem:[%s185 + $0x8] sm:$0xff]
        %v189 = vld [vmem:[%s2] sm:$0x1]
        %v190 = vld [vmem:[%s2 + $0x1] sm:$0x1]
        %v191 = vld [vmem:[%s2 + $0x2] sm:$0x1]
        %v192 = vld [vmem:[%s2 + $0x3] sm:$0x1]
        %v193 = vld [vmem:[%s2 + $0x4] sm:$0x1]
        %v194 = vld [vmem:[%s2 + $0x5] sm:$0x1]
        %v195 = vld [vmem:[%s2 + $0x6] sm:$0x1]
        %v196 = vld [vmem:[%s2 + $0x7] sm:$0x1]
        %198 = vset.pattern.permute.xlu0 2
        %199 = vperm.xlu0 %198, %v186
        %v200 = vpop.permute.xlu0 %199
        %v202 = vlaneseq
        %v203 = vshrl.u32 %v202, 7
        %v204 = vsub.s32 0, %v203
        %v205 = vrot.slane %v195, %v204
        %v206 = vmin.f32 %v200, %v205
        %207 = vset.pattern.permute.xlu0 0
        %208 = vperm.xlu0 %207, %v186
        %v209 = vpop.permute.xlu0 %208
        %v211 = vlaneseq
        %v212 = vshrl.u32 %v211, 7
        %v213 = vsub.s32 0, %v212
        %v214 = vrot.slane %v193, %v213
        %v215 = vmax.f32 %v209, %v214
        %v216 = vsub.f32 %v206, %v215
        %v217 = vmax.f32 %v216, 0.0
        %218 = vset.pattern.permute.xlu0 3
        %219 = vperm.xlu0 %218, %v186
        %v220 = vpop.permute.xlu0 %219
        %v222 = vlaneseq
        %v223 = vshrl.u32 %v222, 7
        %v224 = vsub.s32 0, %v223
        %v225 = vrot.slane %v196, %v224
        %v226 = vmin.f32 %v220, %v225
        %227 = vset.pattern.permute.xlu0 1
        %228 = vperm.xlu0 %227, %v186
        %v229 = vpop.permute.xlu0 %228
        %v231 = vlaneseq
        %v232 = vshrl.u32 %v231, 7
        %v233 = vsub.s32 0, %v232
        %v234 = vrot.slane %v194, %v233
        %v235 = vmax.f32 %v229, %v234
        %v236 = vsub.f32 %v226, %v235
        %v237 = vmax.f32 %v236, 0.0
        %v238 = vmul.f32 %v217, %v237
        %239 = vrot.lane.b32.xlu0 %v186, 2
        %v240 = vpop.permute.xlu0 %239
        %v242 = vsub.f32 %v186, %v240
        %244 = vrot.lane.b32.xlu0 %v242, 127
        %v245 = vpop.permute.xlu0 %244
        %v247 = vmul.f32 %v242, %v245
        %v248 = vsub.f32 %v195, %v193
        %v249 = vsub.f32 %v196, %v194
        %v250 = vmul.f32 %v248, %v249
        %252 = vset.pattern.permute.xlu0 2
        %253 = vperm.xlu0 %252, %v247
        %v254 = vpop.permute.xlu0 %253
        %v256 = vlaneseq
        %v257 = vshrl.u32 %v256, 7
        %v258 = vsub.s32 0, %v257
        %v259 = vrot.slane %v250, %v258
        %v260 = vadd.f32 %v254, %v259
        %v261 = vsub.f32 %v260, %v238
        %v262 = vmax.f32 %v261, 1e-12
        %v263 = vrcp.pop %v262
        %v264 = vmul.f32 %v238, %v263
        %v265 = vlaneseq
        %v266 = vand.u32 %v265, 127
        %v267 = vlaneseq
        %v268 = vshrl.u32 %v267, 7
        %269 = vmax.xlane.f32.xlu0 %v264
        %v270 = vpop.xlane.xlu0 %269
        %vm271 = vcmp.eq.f32.partialorder %v264, %v270
        %v272 = vsel %vm271, %v266, 128
        %v273 = vand.u32 %v272, 65535
        %v274 = vshra.s32 %v272, 16
        %v275 = vcvt.s32.f32 %v273
        %v276 = vcvt.s32.f32 %v274
        %277 = vmin.xlane.f32.xlu0 %v276
        %v278 = vpop.xlane.xlu0 %277
        %vm279 = vcmp.eq.f32.partialorder %v276, %v278
        %v280 = vsel %vm279, %v275, inf
        %281 = vmin.xlane.f32.xlu0 %v280
        %v282 = vpop.xlane.xlu0 %281
        %v283 = vcvt.f32.s32 %v282
        %v284 = vcvt.f32.s32 %v278
        %v285 = vshll.u32 %v284, 16
        %v286 = vadd.s32 %v285, %v283
        %vm287 = vcmp.ge.f32.partialorder %v270, 0.2
        %v288 = vsel %vm287, 1, 0
        %v289 = vrot.slane %v288, 4
        %vm290 = vcmp.gt.s32.totalorder %v288, %v289
        %v291 = vsel %vm290, %v288, %v289
        %v292 = vrot.slane %v291, 2
        %vm293 = vcmp.gt.s32.totalorder %v291, %v292
        %v294 = vsel %vm293, %v291, %v292
        %v295 = vrot.slane %v294, 1
        %vm296 = vcmp.gt.s32.totalorder %v294, %v295
        %v297 = vsel %vm296, %v294, %v295
        %s298 = vtos %v297
        %p299 = scmp.gt.s32.totalorder %s298, 0
        %v300 = vrot.slane %v264, 4
        %v301 = vmax.f32 %v264, %v300
        %v302 = vrot.slane %v301, 2
        %v303 = vmax.f32 %v301, %v302
        %v304 = vrot.slane %v303, 1
        %v305 = vmax.f32 %v303, %v304
        %vm306 = vcmp.eq.f32.partialorder %v264, %v305
        %v307 = vsel %vm306, %v268, 8
        %v308 = vrot.slane %v307, 4
        %vm309 = vcmp.lt.s32.totalorder %v307, %v308
        %v310 = vsel %vm309, %v307, %v308
        %v311 = vrot.slane %v310, 2
        %vm312 = vcmp.lt.s32.totalorder %v310, %v311
        %v313 = vsel %vm312, %v310, %v311
        %v314 = vrot.slane %v313, 1
        %vm315 = vcmp.lt.s32.totalorder %v313, %v314
        %v316 = vsel %vm315, %v313, %v314
        %vm317 = vcmp.eq.s32.totalorder %v266, %v286
        %vm318 = vcmp.eq.s32.totalorder %v288, 1
        %vm319 = vmand %vm317, %vm318
        %v320 = vsel %vm319, 1, 0
        %v321 = vrot.slane %v320, 4
        %vm322 = vcmp.gt.s32.totalorder %v320, %v321
        %v323 = vsel %vm322, %v320, %v321
        %v324 = vrot.slane %v323, 2
        %vm325 = vcmp.gt.s32.totalorder %v323, %v324
        %v326 = vsel %vm325, %v323, %v324
        %v327 = vrot.slane %v326, 1
        %vm328 = vcmp.gt.s32.totalorder %v326, %v327
        %v329 = vsel %vm328, %v326, %v327
        %vm330 = vcmp.gt.s32.totalorder %v329, 0
        %v331 = vsel %vm330, 2.0, %v305
        %v332 = vsel %vm317, %v268, 4294967295
        %v333 = vrot.slane %v332, 4
        %vm334 = vcmp.gt.s32.totalorder %v332, %v333
        %v335 = vsel %vm334, %v332, %v333
        %v336 = vrot.slane %v335, 2
        %vm337 = vcmp.gt.s32.totalorder %v335, %v336
        %v338 = vsel %vm337, %v335, %v336
        %v339 = vrot.slane %v338, 1
        %vm340 = vcmp.gt.s32.totalorder %v338, %v339
        %v341 = vsel %vm340, %v338, %v339
        %vm342 = vcmp.ge.s32.totalorder %v341, 0
        %v343 = vsel %vm342, %v341, %v316
        %345 = vset.pattern.permute.xlu0 0
        %346 = vperm.xlu0 %345, %v187
        %v347 = vpop.permute.xlu0 %346
        %350 = vset.pattern.permute.xlu0 0
        %351 = vperm.xlu0 %350, %v188
        %v352 = vpop.permute.xlu0 %351
        %vm354 = vcmp.eq.s32.totalorder %v343, 1
        %v355 = vsel %vm354, 1, 0
        %vm356 = vcmp.eq.s32.totalorder %v355, 1
        %357 = vset.pattern.permute.xlu0 1
        %358 = vperm.xlu0 %357, %v187
        %v359 = vpop.permute.xlu0 %358
        %361 = vset.pattern.permute.xlu0 1
        %362 = vperm.xlu0 %361, %v188
        %v363 = vpop.permute.xlu0 %362
        %v365 = vsel %vm356, %v359, %v347
        %v366 = vsel %vm356, %v363, %v352
        %vm367 = vcmp.eq.s32.totalorder %v343, 2
        %v368 = vsel %vm367, 1, 0
        %vm369 = vcmp.eq.s32.totalorder %v368, 1
        %370 = vset.pattern.permute.xlu0 2
        %371 = vperm.xlu0 %370, %v187
        %v372 = vpop.permute.xlu0 %371
        %374 = vset.pattern.permute.xlu0 2
        %375 = vperm.xlu0 %374, %v188
        %v376 = vpop.permute.xlu0 %375
        %v378 = vsel %vm369, %v372, %v365
        %v379 = vsel %vm369, %v376, %v366
        %vm380 = vcmp.eq.s32.totalorder %v343, 3
        %v381 = vsel %vm380, 1, 0
        %vm382 = vcmp.eq.s32.totalorder %v381, 1
        %383 = vset.pattern.permute.xlu0 3
        %384 = vperm.xlu0 %383, %v187
        %v385 = vpop.permute.xlu0 %384
        %387 = vset.pattern.permute.xlu0 3
        %388 = vperm.xlu0 %387, %v188
        %v389 = vpop.permute.xlu0 %388
        %v391 = vsel %vm382, %v385, %v378
        %v392 = vsel %vm382, %v389, %v379
        %vm393 = vcmp.eq.s32.totalorder %v343, 4
        %v394 = vsel %vm393, 1, 0
        %vm395 = vcmp.eq.s32.totalorder %v394, 1
        %396 = vset.pattern.permute.xlu0 4
        %397 = vperm.xlu0 %396, %v187
        %v398 = vpop.permute.xlu0 %397
        %400 = vset.pattern.permute.xlu0 4
        %401 = vperm.xlu0 %400, %v188
        %v402 = vpop.permute.xlu0 %401
        %v404 = vsel %vm395, %v398, %v391
        %v405 = vsel %vm395, %v402, %v392
        %vm406 = vcmp.eq.s32.totalorder %v343, 5
        %v407 = vsel %vm406, 1, 0
        %vm408 = vcmp.eq.s32.totalorder %v407, 1
        %409 = vset.pattern.permute.xlu0 5
        %410 = vperm.xlu0 %409, %v187
        %v411 = vpop.permute.xlu0 %410
        %413 = vset.pattern.permute.xlu0 5
        %414 = vperm.xlu0 %413, %v188
        %v415 = vpop.permute.xlu0 %414
        %v417 = vsel %vm408, %v411, %v404
        %v418 = vsel %vm408, %v415, %v405
        %vm419 = vcmp.eq.s32.totalorder %v343, 6
        %v420 = vsel %vm419, 1, 0
        %vm421 = vcmp.eq.s32.totalorder %v420, 1
        %422 = vset.pattern.permute.xlu0 6
        %423 = vperm.xlu0 %422, %v187
        %v424 = vpop.permute.xlu0 %423
        %426 = vset.pattern.permute.xlu0 6
        %427 = vperm.xlu0 %426, %v188
        %v428 = vpop.permute.xlu0 %427
        %v430 = vsel %vm421, %v424, %v417
        %v431 = vsel %vm421, %v428, %v418
        %vm432 = vcmp.eq.s32.totalorder %v343, 7
        %v433 = vsel %vm432, 1, 0
        %vm434 = vcmp.eq.s32.totalorder %v433, 1
        %435 = vset.pattern.permute.xlu0 7
        %436 = vperm.xlu0 %435, %v187
        %v437 = vpop.permute.xlu0 %436
        %439 = vset.pattern.permute.xlu0 7
        %440 = vperm.xlu0 %439, %v188
        %v441 = vpop.permute.xlu0 %440
        %v443 = vsel %vm434, %v437, %v430
        %v444 = vsel %vm434, %v441, %v431
        %v445 = vrcp.pop %v191
        %v446 = vrcp.pop %v192
        %v447 = vmul.f32 %v445, 10.0
        %v448 = vmul.f32 %v446, 10.0
        %v450 = vrot.slane %v443, 2
        %v452 = vadd.f32 %v443, %v450
        %v453 = vmul.f32 %v452, 0.5
        %v454 = vsub.f32 %v453, %v189
        %v455 = vmul.f32 %v454, %v447
        %v457 = vrot.slane %v190, 7
        %v459 = vsub.f32 %v453, %v457
        %v461 = vrot.slane %v448, 7
        %v463 = vmul.f32 %v459, %v461
        %v464 = vrot.slane %v443, 6
        %v466 = vsub.f32 %v443, %v464
        %v467 = vmax.f32 %v466, 1e-08
        %v469 = vrot.slane %v445, 6
        %v471 = vmul.f32 %v467, %v469
        %v472 = vlog2.pop %v471
        %v473 = vmul.f32 %v472, 0.6931472
        %v474 = vmul.f32 %v473, 5.0
        %v476 = vrot.slane %v446, 5
        %v478 = vmul.f32 %v467, %v476
        %v479 = vlog2.pop %v478
        %v480 = vmul.f32 %v479, 0.6931472
        %v481 = vmul.f32 %v480, 5.0
        %v483 = vrot.slane %v189, 4
        %v485 = vsub.f32 %v443, %v483
        %v487 = vrot.slane %v447, 4
        %v489 = vmul.f32 %v485, %v487
        %v490 = vrot.slane %v190, 3
        %v492 = vsub.f32 %v443, %v490
        %v493 = vrot.slane %v448, 3
        %v495 = vmul.f32 %v492, %v493
        %v496 = vrot.slane %v189, 2
        %v498 = vsub.f32 %v443, %v496
        %v499 = vrot.slane %v447, 2
        %v501 = vmul.f32 %v498, %v499
        %v502 = vrot.slane %v190, 1
        %v504 = vsub.f32 %v443, %v502
        %v505 = vrot.slane %v448, 1
        %v507 = vmul.f32 %v504, %v505
        %v508 = vsub.f32 %v444, %v189
        %v509 = vmul.f32 %v508, %v447
        %v510 = vsub.f32 %v444, %v457
        %v511 = vmul.f32 %v510, %v461
        %v512 = vrot.slane %v189, 6
        %v514 = vsub.f32 %v444, %v512
        %v515 = vrot.slane %v447, 6
        %v517 = vmul.f32 %v514, %v515
        %v518 = vrot.slane %v190, 5
        %v520 = vsub.f32 %v444, %v518
        %v521 = vrot.slane %v448, 5
        %v523 = vmul.f32 %v520, %v521
        %v524 = vsub.f32 %v444, %v483
        %v525 = vmul.f32 %v524, %v487
        %v526 = vsub.f32 %v444, %v490
        %v527 = vmul.f32 %v526, %v493
        %vm528 = vcmp.lt.f32.partialorder %v331, 0.35
        %v529 = vsel %vm528, 0.0, %v444
        %vm530 = vcmask 1040384
        %v531 = vsel %vm530, %v455, %v463
        %vm532 = vcmask 1041408
        %v533 = vsel %vm532, %v531, %v474
        %vm534 = vcmask 1042432
        %v535 = vsel %vm534, %v533, %v481
        %vm536 = vcmask 1043456
        %v537 = vsel %vm536, %v535, %v489
        %vm538 = vcmask 1044480
        %v539 = vsel %vm538, %v537, %v495
        %vm540 = vcmask 1045504
        %v541 = vsel %vm540, %v539, %v501
        %vm542 = vcmask 1046528
        %v543 = vsel %vm542, %v541, %v507
        %v544 = vsel %vm530, %v509, %v511
        %v545 = vsel %vm532, %v544, %v517
        %v546 = vsel %vm534, %v545, %v523
        %v547 = vsel %vm536, %v546, %v525
        %v548 = vsel %vm538, %v547, %v527
        %v549 = vsel %vm540, %v548, %v529
        %v550 = vsel %vm542, %v549, 0.0
        %s551 = scalar_select %p299, 1, 0
        %v552 = vstv %s551
        %vm553 = vcmp.eq.s32.totalorder %v552, 1
        %v554 = vsel %vm553, %v543, 0.0
        %v555 = vsel %vm553, %v550, 0.0
        %556 = vst [vmem:[%s176] sm:$0xff] %v554
        %557 = vst [vmem:[%s176 + $0x8] sm:$0xff] %v555
        %s558 = sand.u32 %s98, 1
        %s559 = scalar_lea.sflag [#allocation3], %s558
        %s560 = sand.u32 %s98, 1
        %s561 = smul.addr %s560, 16
        %s562 = scalar_lea.vmem [#allocation2], %s561
        // Predicated region
        $region33: #{tpu_custom_call.1} parent=31 // pred_check
          %p563 = pneg %p108
        $region34: #{tpu_custom_call.1} parent=31 // pred_check_branch
          %565 = sbr.rel (%p563) target = $region36
        $region35: #{tpu_custom_call.1} parent=31 // pred_region
          %s567 = ssub.s32 256, 256
          %568 = vsyncadd %s559, %s567
          %s569 = smul.addr %s17, 128
          %s570 = scalar_lea.hbm %s3, %s569
          %s571 = sshll.u32 %s562, 4
          %s572 = int_to_ptr.vmem [resolvable:$true] %s571
          %577 = dma.vmem_to_hbm [thread:$0]  %s572, 256, %s570, %s559, 128, 256, 8
        $region36: #{tpu_custom_call.1} parent=31 // pred_fallthru
          _
      $region32: #{tpu_custom_call.1} parent=5 // pred_fallthru
        _
      %p578 = scmp.le.s32.totalorder 2, %s12
      // Predicated region
      $region37: #{tpu_custom_call.1} parent=5 // pred_check
        %p579 = pneg %p578
      $region38: #{tpu_custom_call.1} parent=5 // pred_check_branch
        %581 = sbr.rel (%p579) target = $region40
      $region39: #{tpu_custom_call.1} parent=5 // pred_region
        %s582 = ssub.s32 %s12, 2
        // Predicated region
        $region41: #{tpu_custom_call.1} parent=39 // pred_check
          %p583 = pneg %p114
        $region42: #{tpu_custom_call.1} parent=39 // pred_check_branch
          %585 = sbr.rel (%p583) target = $region44
        $region43: #{tpu_custom_call.1} parent=39 // pred_region
          %s586 = sand.u32 %s99, 1
          %s587 = scalar_lea.sflag [#allocation3], %s586
          %s588 = sand.u32 %s99, 1
          %s589 = smul.addr %s588, 16
          %s590 = scalar_lea.vmem [#allocation2], %s589
          %591 = dma.done %s587, 256
        $region44: #{tpu_custom_call.1} parent=39 // pred_fallthru
          _
      $region40: #{tpu_custom_call.1} parent=5 // pred_fallthru
        _
    $region6: #{tpu_custom_call.1} parent=1 // loop_footer
      %s16 = sadd.s32 1, %s12
    $region7: #{tpu_custom_call.1} parent=1 // loop_footer_branch
      %11 = sbr.rel target = $region3
    $region8: #{tpu_custom_call.1} parent=1 // loop_exit
      _
    %592 = vsyncpa [#allocation3], 1
    %s593 = scalar_lea.sflag [#allocation3], 1
    %594 = vsyncpa %s593, 1

</llo_original>
